<compile_context>
chip_gen: v6e
topology: v6e:2x2x1
jax: 0.10.0
libtpu: 0.0.40
codegen_flags: <defaults>
</compile_context>

<pallas_src>
import functools

import jax
import jax.numpy as jnp
from jax.experimental import pallas as pl
from jax.experimental.pallas import tpu as pltpu


def _round_up(x, m):
    return (x + m - 1) // m * m


def _clip_loss_tile_kernel(li_ref, lb_ref, lid_ref, lbd_ref, out_ref, *, tm, batch):
    i = pl.program_id(0)
    row0 = i * tm

    # Diagonal mask over the small (tm, tm) diagonal block (labels = arange(B) -> the
    # target logit of global row r sits at global column r, i.e. the block diagonal).
    dshape = (tm, tm)
    local_r = jax.lax.broadcasted_iota(jnp.int32, dshape, 0)
    local_c = jax.lax.broadcasted_iota(jnp.int32, dshape, 1)
    diag_mask = local_r == local_c

    # Mask for padded rows of a ragged last tile.
    row_ids = jax.lax.broadcasted_iota(jnp.int32, (tm, 1), 0) + row0
    valid_row = row_ids < batch

    def _row_ce_sum(strip_ref, diag_ref):
        lg = strip_ref[...]                                   # native dtype, (tm, B)
        # Row max on the native dtype (exact for bf16); f32 only for the reduction math.
        m = jnp.max(lg, axis=-1, keepdims=True).astype(jnp.float32)      # (tm, 1)
        # Upcast fused into the exp expression — no standalone f32 copy of the strip.
        s = jnp.sum(jnp.exp(lg.astype(jnp.float32) - m), axis=-1, keepdims=True)
        lse = m + jnp.log(s)                                             # (tm, 1)

        # Target = diagonal of the small (tm, tm) block; select is NaN-safe for any
        # garbage in out-of-bounds rows/cols of a ragged last block.
        dg = diag_ref[...].astype(jnp.float32)                           # (tm, tm)
        tgt = jnp.sum(jnp.where(diag_mask, dg, 0.0), axis=-1, keepdims=True)

        per_row = lse - tgt                                              # (tm, 1)
        # Padded rows may hold garbage (even NaN); jnp.where (true select) drops it.
        return jnp.sum(jnp.where(valid_row, per_row, 0.0))

    partial = _row_ce_sum(li_ref, lid_ref) + _row_ce_sum(lb_ref, lbd_ref)

    # Lane-dense (8, 128) unmasked store: partial at [0, 0], zeros elsewhere, so the
    # wrapper's plain jnp.sum over all partial blocks is exact (no strided gather).
    r8 = jax.lax.broadcasted_iota(jnp.int32, (8, 128), 0)
    c128 = jax.lax.broadcasted_iota(jnp.int32, (8, 128), 1)
    out_ref[...] = jnp.where((r8 == 0) & (c128 == 0), partial, 0.0)


def clip_loss(logits_per_image, logits_per_brain, *, max_tm=512, tiny_b=256):
    assert logits_per_image.shape == logits_per_brain.shape
    assert logits_per_image.ndim == 2
    B, C = logits_per_image.shape
    assert B == C, "CLIP logits are [B, B] (labels = arange(B))"
    itemsize = jnp.dtype(logits_per_image.dtype).itemsize

    # Generation-aware VMEM budgeting: v7x has 64 MiB per TensorCore, v5e/v6e 128 MiB.
    try:
        vmem_cap = int(pltpu.get_tpu_info().vmem_capacity_bytes)
    except Exception:
        vmem_cap = 64 << 20  # conservative fallback (assume the smallest part)
    if vmem_cap <= (64 << 20):
        vmem_budget_bytes = 26 << 20   # working set target on v7x
        vmem_limit_cap = 44 << 20      # scoped-limit cap with headroom under 64 MiB
    else:
        vmem_budget_bytes = 40 << 20   # v5e / v6e (128 MiB parts)
        vmem_limit_cap = 60 << 20

    def _working_set(t):
        return (4 * t * B * itemsize      # 2 strip inputs x 2 pipeline buffers
                + 4 * t * t * itemsize    # 2 diagonal blocks x 2 pipeline buffers
                + t * B * 4)              # in-body f32 temporaries (exp of one strip)

    if B <= tiny_b:
        # Tiny batch: single full-extent tile (block dims == array dims are always legal).
        tm = B
    else:
        # Aim for >= 8 row tiles (pipelining + megacore), 128-aligned tm, floor 128.
        tm = min(max_tm, max(128, _round_up(pl.cdiv(B, 8), 128)))
        while tm > 128 and _working_set(tm) > vmem_budget_bytes:
            tm -= 128
        # TODO(synk): for B so large that even 128-row strips blow VMEM, add a second
        # "arbitrary" column-tile grid axis with an online (flash-style) logsumexp.

    num_tiles = pl.cdiv(B, tm)
    vmem_limit = int(min(max(_working_set(tm) + (4 << 20), 16 << 20), vmem_limit_cap))

    kernel = functools.partial(_clip_loss_tile_kernel, tm=tm, batch=B)

    partials = pl.pallas_call(
        kernel,
        out_shape=jax.ShapeDtypeStruct((num_tiles * 8, 128), jnp.float32),
        grid=(num_tiles,),
        in_specs=[
            pl.BlockSpec((tm, B), lambda i: (i, 0)),      # (tm, B) strip of logits_per_image
            pl.BlockSpec((tm, B), lambda i: (i, 0)),      # (tm, B) strip of logits_per_brain
            pl.BlockSpec((tm, tm), lambda i: (i, i)),     # diagonal block of logits_per_image
            pl.BlockSpec((tm, tm), lambda i: (i, i)),     # diagonal block of logits_per_brain
        ],
        out_specs=pl.BlockSpec((8, 128), lambda i: (i, 0)),
        compiler_params=pltpu.CompilerParams(
            dimension_semantics=("parallel",),
            vmem_limit_bytes=vmem_limit,
        ),
        cost_estimate=pl.CostEstimate(
            flops=int(8 * B * B),
            transcendentals=int(2 * B * B),
            bytes_accessed=int(2 * B * (B + tm) * itemsize + num_tiles * 8 * 128 * 4),
        ),
    )(logits_per_image, logits_per_brain, logits_per_image, logits_per_brain)

    # Each (8, 128) block holds its tile's partial at [0, 0] and zeros elsewhere.
    total = jnp.sum(partials)
    # (mean_i + mean_b) / 2  ==  (sum_i + sum_b) / (2 * B)
    return total / (2.0 * B)


def _reference_clip_loss(li, lb):
    # Pure-JAX reference (matches torch cross_entropy with labels = arange(B)).
    B = li.shape[0]

    def ce(lg):
        logp = jax.nn.log_softmax(lg.astype(jnp.float32), axis=-1)
        return -jnp.mean(logp[jnp.arange(B), jnp.arange(B)])

    return (ce(li) + ce(lb)) / 2.0


if __name__ == "__main__":
    key = jax.random.PRNGKey(0)
    k1, k2, k3, k4 = jax.random.split(key, 4)

    # Tiny shape consistent with the module: both logit matrices are [B, B].
    B = 8
    logits_per_image = jax.random.normal(k1, (B, B), dtype=jnp.float32) * 3.0
    logits_per_brain = jax.random.normal(k2, (B, B), dtype=jnp.float32) * 3.0
    loss = jax.block_until_ready(clip_loss(logits_per_image, logits_per_brain))
    ref = _reference_clip_loss(logits_per_image, logits_per_brain)
    assert jnp.allclose(loss, ref, atol=1e-5, rtol=1e-5), (loss, ref)

    # Tiled path: grid > 1, ragged last row tile, lane padding (300 % 128 != 0),
    # ragged diagonal blocks in both dims.
    B2 = 300
    li2 = jax.random.normal(k3, (B2, B2), dtype=jnp.float32)
    lb2 = jax.random.normal(k4, (B2, B2), dtype=jnp.float32)
    loss2 = jax.block_until_ready(clip_loss(li2, lb2))
    ref2 = _reference_clip_loss(li2, lb2)
    assert jnp.allclose(loss2, ref2, atol=1e-4, rtol=1e-4), (loss2, ref2)

    # bf16 ingest path (native-dtype row max, f32 reduction math).
    li3 = li2.astype(jnp.bfloat16)
    lb3 = lb2.astype(jnp.bfloat16)
    loss3 = jax.block_until_ready(clip_loss(li3, lb3))
    ref3 = _reference_clip_loss(li3, lb3)
    assert jnp.allclose(loss3, ref3, atol=2e-3, rtol=2e-3), (loss3, ref3)

    print("KERNEL_OK")
</pallas_src>

<mosaic_0001>
module attributes {stable_mosaic.version = 11 : i64} {
  func.func @_clip_loss_tile_kernel(%arg0: i32, %arg1: memref<8x8xf32, #tpu.memory_space<vmem>>, %arg2: memref<8x8xf32, #tpu.memory_space<vmem>>, %arg3: memref<8x8xf32, #tpu.memory_space<vmem>>, %arg4: memref<8x8xf32, #tpu.memory_space<vmem>>, %arg5: memref<8x128xf32, #tpu.memory_space<vmem>>) attributes {dimension_semantics = [#tpu.dimension_semantics<parallel>], iteration_bounds = array<i64: 1>, scalar_prefetch = 0 : i64, scratch_operands = 0 : i64, tpu.core_type = #tpu.core_type<tc>, window_params = [{transform_indices = @transform_0, window_bounds = array<i64: 8, 8>}, {transform_indices = @transform_1, window_bounds = array<i64: 8, 8>}, {transform_indices = @transform_2, window_bounds = array<i64: 8, 8>}, {transform_indices = @transform_3, window_bounds = array<i64: 8, 8>}, {transform_indices = @transform_4, window_bounds = array<i64: 8, 128>}]} {
    %c8_i32 = arith.constant 8 : i32
    %0 = arith.muli %arg0, %c8_i32 : i32
    %1 = tpu.iota {dimensions = array<i32: 0>} : vector<8x8xi32>
    %2 = tpu.iota {dimensions = array<i32: 1>} : vector<8x8xi32>
    %3 = arith.cmpi eq, %1, %2 : vector<8x8xi32>
    %4 = tpu.iota {dimensions = array<i32: 0>} : vector<8x1xi32>
    %5 = vector.broadcast %0 : i32 to vector<8x1xi32>
    %6 = arith.addi %4, %5 : vector<8x1xi32>
    %c8_i32_0 = arith.constant 8 : i32
    %7 = vector.broadcast %c8_i32_0 : i32 to vector<8x1xi32>
    %8 = arith.cmpi slt, %6, %7 : vector<8x1xi32>
    %c0 = arith.constant 0 : index
    %c0_1 = arith.constant 0 : index
    %9 = vector.load %arg1[%c0, %c0_1] : memref<8x8xf32, #tpu.memory_space<vmem>>, vector<8x8xf32>
    %cst = arith.constant dense<0xFF800000> : vector<8xf32>
    %10 = vector.multi_reduction <maximumf>, %9, %cst [1] : vector<8x8xf32> to vector<8xf32>
    %11 = vector.shape_cast %10 : vector<8xf32> to vector<8x1xf32>
    %12 = vector.broadcast %11 : vector<8x1xf32> to vector<8x8xf32>
    %13 = arith.subf %9, %12 : vector<8x8xf32>
    %14 = math.exp %13 : vector<8x8xf32>
    %cst_2 = arith.constant dense<0.000000e+00> : vector<8xf32>
    %15 = vector.multi_reduction <add>, %14, %cst_2 [1] : vector<8x8xf32> to vector<8xf32>
    %16 = vector.shape_cast %15 : vector<8xf32> to vector<8x1xf32>
    %17 = math.log %16 : vector<8x1xf32>
    %18 = arith.addf %11, %17 : vector<8x1xf32>
    %c0_3 = arith.constant 0 : index
    %c0_4 = arith.constant 0 : index
    %19 = vector.load %arg3[%c0_3, %c0_4] : memref<8x8xf32, #tpu.memory_space<vmem>>, vector<8x8xf32>
    %cst_5 = arith.constant 0.000000e+00 : f32
    %20 = vector.broadcast %cst_5 : f32 to vector<8x8xf32>
    %21 = arith.select %3, %19, %20 : vector<8x8xi1>, vector<8x8xf32>
    %cst_6 = arith.constant dense<0.000000e+00> : vector<8xf32>
    %22 = vector.multi_reduction <add>, %21, %cst_6 [1] : vector<8x8xf32> to vector<8xf32>
    %23 = vector.shape_cast %22 : vector<8xf32> to vector<8x1xf32>
    %24 = arith.subf %18, %23 : vector<8x1xf32>
    %cst_7 = arith.constant 0.000000e+00 : f32
    %25 = vector.broadcast %cst_7 : f32 to vector<8x1xf32>
    %26 = arith.select %8, %24, %25 : vector<8x1xi1>, vector<8x1xf32>
    %27 = vector.shape_cast %26 : vector<8x1xf32> to vector<1x8x1xf32>
    %cst_8 = arith.constant dense<0.000000e+00> : vector<1xf32>
    %28 = vector.multi_reduction <add>, %27, %cst_8 [1, 2] : vector<1x8x1xf32> to vector<1xf32>
    %29 = vector.shape_cast %28 : vector<1xf32> to vector<1x1x1xf32>
    %30 = vector.extract %29[0, 0, 0] : f32 from vector<1x1x1xf32>
    %c0_9 = arith.constant 0 : index
    %c0_10 = arith.constant 0 : index
    %31 = vector.load %arg2[%c0_9, %c0_10] : memref<8x8xf32, #tpu.memory_space<vmem>>, vector<8x8xf32>
    %cst_11 = arith.constant dense<0xFF800000> : vector<8xf32>
    %32 = vector.multi_reduction <maximumf>, %31, %cst_11 [1] : vector<8x8xf32> to vector<8xf32>
    %33 = vector.shape_cast %32 : vector<8xf32> to vector<8x1xf32>
    %34 = vector.broadcast %33 : vector<8x1xf32> to vector<8x8xf32>
    %35 = arith.subf %31, %34 : vector<8x8xf32>
    %36 = math.exp %35 : vector<8x8xf32>
    %cst_12 = arith.constant dense<0.000000e+00> : vector<8xf32>
    %37 = vector.multi_reduction <add>, %36, %cst_12 [1] : vector<8x8xf32> to vector<8xf32>
    %38 = vector.shape_cast %37 : vector<8xf32> to vector<8x1xf32>
    %39 = math.log %38 : vector<8x1xf32>
    %40 = arith.addf %33, %39 : vector<8x1xf32>
    %c0_13 = arith.constant 0 : index
    %c0_14 = arith.constant 0 : index
    %41 = vector.load %arg4[%c0_13, %c0_14] : memref<8x8xf32, #tpu.memory_space<vmem>>, vector<8x8xf32>
    %cst_15 = arith.constant 0.000000e+00 : f32
    %42 = vector.broadcast %cst_15 : f32 to vector<8x8xf32>
    %43 = arith.select %3, %41, %42 : vector<8x8xi1>, vector<8x8xf32>
    %cst_16 = arith.constant dense<0.000000e+00> : vector<8xf32>
    %44 = vector.multi_reduction <add>, %43, %cst_16 [1] : vector<8x8xf32> to vector<8xf32>
    %45 = vector.shape_cast %44 : vector<8xf32> to vector<8x1xf32>
    %46 = arith.subf %40, %45 : vector<8x1xf32>
    %cst_17 = arith.constant 0.000000e+00 : f32
    %47 = vector.broadcast %cst_17 : f32 to vector<8x1xf32>
    %48 = arith.select %8, %46, %47 : vector<8x1xi1>, vector<8x1xf32>
    %49 = vector.shape_cast %48 : vector<8x1xf32> to vector<1x8x1xf32>
    %cst_18 = arith.constant dense<0.000000e+00> : vector<1xf32>
    %50 = vector.multi_reduction <add>, %49, %cst_18 [1, 2] : vector<1x8x1xf32> to vector<1xf32>
    %51 = vector.shape_cast %50 : vector<1xf32> to vector<1x1x1xf32>
    %52 = vector.extract %51[0, 0, 0] : f32 from vector<1x1x1xf32>
    %53 = arith.addf %30, %52 : f32
    %54 = tpu.iota {dimensions = array<i32: 0>} : vector<8x128xi32>
    %55 = tpu.iota {dimensions = array<i32: 1>} : vector<8x128xi32>
    %c0_i32 = arith.constant 0 : i32
    %56 = vector.broadcast %c0_i32 : i32 to vector<8x128xi32>
    %57 = arith.cmpi eq, %54, %56 : vector<8x128xi32>
    %c0_i32_19 = arith.constant 0 : i32
    %58 = vector.broadcast %c0_i32_19 : i32 to vector<8x128xi32>
    %59 = arith.cmpi eq, %55, %58 : vector<8x128xi32>
    %60 = arith.andi %57, %59 : vector<8x128xi1>
    %cst_20 = arith.constant 0.000000e+00 : f32
    %61 = vector.broadcast %53 : f32 to vector<8x128xf32>
    %62 = vector.broadcast %cst_20 : f32 to vector<8x128xf32>
    %63 = arith.select %60, %61, %62 : vector<8x128xi1>, vector<8x128xf32>
    %c0_21 = arith.constant 0 : index
    %c0_22 = arith.constant 0 : index
    %64 = vector.load %arg5[%c0_21, %c0_22] : memref<8x128xf32, #tpu.memory_space<vmem>>, vector<8x128xf32>
    tpu.vector_store %arg5[%c0_21, %c0_22], %63 {strides = array<i32>} : memref<8x128xf32, #tpu.memory_space<vmem>>, vector<8x128xf32>,
    return
  }
  func.func @transform_0(%arg0: i32) -> (i32, i32) {
    %c0_i32 = arith.constant 0 : i32
    %c0_i32_0 = arith.constant 0 : i32
    return %arg0, %c0_i32 : i32, i32
  }
  func.func @transform_1(%arg0: i32) -> (i32, i32) {
    %c0_i32 = arith.constant 0 : i32
    %c0_i32_0 = arith.constant 0 : i32
    return %arg0, %c0_i32 : i32, i32
  }
  func.func @transform_2(%arg0: i32) -> (i32, i32) {
    %c0_i32 = arith.constant 0 : i32
    return %arg0, %arg0 : i32, i32
  }
  func.func @transform_3(%arg0: i32) -> (i32, i32) {
    %c0_i32 = arith.constant 0 : i32
    return %arg0, %arg0 : i32, i32
  }
  func.func @transform_4(%arg0: i32) -> (i32, i32) {
    %c0_i32 = arith.constant 0 : i32
    %c0_i32_0 = arith.constant 0 : i32
    return %arg0, %c0_i32 : i32, i32
  }
}

</mosaic_0001>

<llo_original>
// kernel: tpu_custom_call.1
$region0: #{tpu_custom_call.1}
  #allocation0 [shape = 'u32[]', space=smem, size = 0x4, offset = 0x4, fixed_abs, tag = 'smem constant byte address 0x4 - core index']
  #allocation1 [shape = 'u32[144,128]{1,0:T(1,128)}', space=vmem, size = 0x12000, scoped, tag = 'internal scratch']
  %s0 = inlined_call_operand.hbm [shape: f32[8,8], index: 0, kind: input, shape index: {}]
  %s1 = inlined_call_operand.hbm [shape: f32[8,8], index: 1, kind: input, shape index: {}]
  %s2 = inlined_call_operand.hbm [shape: f32[8,8], index: 2, kind: input, shape index: {}]
  %s3 = inlined_call_operand.hbm [shape: f32[8,8], index: 3, kind: input, shape index: {}]
  %s4 = inlined_call_operand.hbm [shape: f32[8,128], index: 4, kind: output, shape index: {}]
  %s5 = sld [smem:[#allocation0]]
  $region42: #{tpu_custom_call.1} parent=0
    _
  %s7 = ssub.s32 1, %s5
  %s8 = scalar_select 0, %s7, %s5
  $region1: #{tpu_custom_call.1} parent=0
    #allocation2 [shape = 'u8[4096]{0}', space=vmem, size = 0x1000, scoped, tag = 'input window, operand 0, single buffered']
    #allocation3 [shape = 's32[1]{0}', space=sflag, size = 0x4, scoped, tag = 'scoped memory for tpu_custom_call.1']
    #allocation4 [shape = 's32[1]{0}', space=sflag, size = 0x4, scoped, tag = 'scoped memory for tpu_custom_call.1']
    #allocation5 [shape = 'u8[4096]{0}', space=vmem, size = 0x1000, scoped, tag = 'input window, operand 1, single buffered']
    #allocation6 [shape = 's32[1]{0}', space=sflag, size = 0x4, scoped, tag = 'scoped memory for tpu_custom_call.1']
    #allocation7 [shape = 'u8[4096]{0}', space=vmem, size = 0x1000, scoped, tag = 'input window, operand 2, single buffered']
    #allocation8 [shape = 'u8[4096]{0}', space=vmem, size = 0x1000, scoped, tag = 'input window, operand 3, single buffered']
    #allocation9 [shape = 's32[1]{0}', space=sflag, size = 0x4, scoped, tag = 'scoped memory for tpu_custom_call.1']
    #allocation10 [shape = 'u8[4096]{0}', space=vmem, size = 0x1000, scoped, tag = 'output window, operand 0, single buffered']
    %9 = vsyncpa [#allocation3], 0
    %10 = vsyncpa [#allocation6], 0
    %11 = vsyncpa [#allocation9], 0
    %12 = vsyncpa [#allocation4], 0
    // Predicated region
    $region2: #{tpu_custom_call.1} parent=1 // pred_check
      _
    $region3: #{tpu_custom_call.1} parent=1 // pred_check_branch
      %14 = sbr.rel (0) target = $region5
    $region4: #{tpu_custom_call.1} parent=1 // pred_region
      %s16 = ssub.s32 128, 128
      %17 = vsyncadd [#allocation3], %s16
      %s19 = sshll.u32 [#allocation2], 4
      %s20 = int_to_ptr.vmem [resolvable:$true] %s19
      %22 = dma.hbm_to_vmem [thread:$0]  %s0, 128, %s20, [#allocation3]
    $region5: #{tpu_custom_call.1} parent=1 // pred_fallthru
      _
    // Predicated region
    $region6: #{tpu_custom_call.1} parent=1 // pred_check
      _
    $region7: #{tpu_custom_call.1} parent=1 // pred_check_branch
      %24 = sbr.rel (0) target = $region9
    $region8: #{tpu_custom_call.1} parent=1 // pred_region
      %s26 = ssub.s32 128, 128
      %27 = vsyncadd [#allocation6], %s26
      %s29 = sshll.u32 [#allocation5], 4
      %s30 = int_to_ptr.vmem [resolvable:$true] %s29
      %32 = dma.hbm_to_vmem [thread:$0]  %s1, 128, %s30, [#allocation6]
    $region9: #{tpu_custom_call.1} parent=1 // pred_fallthru
      _
    // Predicated region
    $region10: #{tpu_custom_call.1} parent=1 // pred_check
      _
    $region11: #{tpu_custom_call.1} parent=1 // pred_check_branch
      %34 = sbr.rel (0) target = $region13
    $region12: #{tpu_custom_call.1} parent=1 // pred_region
      %s36 = ssub.s32 128, 128
      %37 = vsyncadd [#allocation6], %s36
      %s39 = sshll.u32 [#allocation7], 4
      %s40 = int_to_ptr.vmem [resolvable:$true] %s39
      %42 = dma.hbm_to_vmem [thread:$0]  %s2, 128, %s40, [#allocation6]
    $region13: #{tpu_custom_call.1} parent=1 // pred_fallthru
      _
    // Predicated region
    $region14: #{tpu_custom_call.1} parent=1 // pred_check
      _
    $region15: #{tpu_custom_call.1} parent=1 // pred_check_branch
      %44 = sbr.rel (0) target = $region17
    $region16: #{tpu_custom_call.1} parent=1 // pred_region
      %s46 = ssub.s32 128, 128
      %47 = vsyncadd [#allocation9], %s46
      %s49 = sshll.u32 [#allocation8], 4
      %s50 = int_to_ptr.vmem [resolvable:$true] %s49
      %52 = dma.hbm_to_vmem [thread:$0]  %s3, 128, %s50, [#allocation9]
    $region17: #{tpu_custom_call.1} parent=1 // pred_fallthru
      _
    // Predicated region
    $region18: #{tpu_custom_call.1} parent=1 // pred_check
      _
    $region19: #{tpu_custom_call.1} parent=1 // pred_check_branch
      %54 = sbr.rel (0) target = $region21
    $region20: #{tpu_custom_call.1} parent=1 // pred_region
      %55 = dma.done [#allocation3], 128
    $region21: #{tpu_custom_call.1} parent=1 // pred_fallthru
      _
    // Predicated region
    $region22: #{tpu_custom_call.1} parent=1 // pred_check
      _
    $region23: #{tpu_custom_call.1} parent=1 // pred_check_branch
      %57 = sbr.rel (0) target = $region25
    $region24: #{tpu_custom_call.1} parent=1 // pred_region
      %58 = dma.done [#allocation6], 128
    $region25: #{tpu_custom_call.1} parent=1 // pred_fallthru
      _
    // Predicated region
    $region26: #{tpu_custom_call.1} parent=1 // pred_check
      _
    $region27: #{tpu_custom_call.1} parent=1 // pred_check_branch
      %60 = sbr.rel (0) target = $region29
    $region28: #{tpu_custom_call.1} parent=1 // pred_region
      %61 = dma.done [#allocation6], 128
    $region29: #{tpu_custom_call.1} parent=1 // pred_fallthru
      _
    // Predicated region
    $region30: #{tpu_custom_call.1} parent=1 // pred_check
      _
    $region31: #{tpu_custom_call.1} parent=1 // pred_check_branch
      %63 = sbr.rel (0) target = $region33
    $region32: #{tpu_custom_call.1} parent=1 // pred_region
      %64 = dma.done [#allocation9], 128
    $region33: #{tpu_custom_call.1} parent=1 // pred_fallthru
      _
    %s65 = smul.u32 0, 8
    %v66 = vlaneseq
    %v67 = vshrl.u32 %v66, 7
    %v68 = vlaneseq
    %v69 = vand.u32 %v68, 127
    %vm70 = vcmp.eq.s32.totalorder %v67, %v69
    %v71 = vstv %s65
    %v72 = vadd.s32 %v67, %v71
    %vm73 = vcmp.lt.s32.totalorder %v72, 8
    %v74 = vld [vmem:[#allocation2] sm:$0xff]
    %vm75 = vcmask 64512
    %v76 = vsel %vm75, %v74, -inf
    %77 = vmax.xlane.f32.xlu0 %v76
    %v78 = vpop.xlane.xlu0 %77
    %v79 = vsub.f32 %v74, %v78
    %v80 = vmul.f32 %v79, 1.442695
    %v81 = vpow.pop %v80
    %v82 = vsel %vm75, %v81, 0.0
    %83 = vadd.xlane.f32.xlu0 %v82
    %v84 = vpop.xlane.xlu0 %83
    %v85 = vlog2.pop %v84
    %v86 = vmul.f32 %v85, 0.6931472
    %v87 = vadd.f32 %v78, %v86
    %v88 = vld [vmem:[#allocation7] sm:$0xff]
    %v89 = vsel %vm70, %v88, 0.0
    %v90 = vsel %vm75, %v89, 0.0
    %91 = vadd.xlane.f32.xlu0 %v90
    %v92 = vpop.xlane.xlu0 %91
    %v93 = vsub.f32 %v87, %v92
    %v94 = vsel %vm73, %v93, 0.0
    %vm95 = vcmask 7168
    %v96 = vsel %vm95, %v94, 0.0
    %97 = vadd.xlane.f32.xlu0 %v96
    %v98 = vpop.xlane.xlu0 %97
    %v99 = vrot.slane %v98, 4
    %v100 = vadd.f32 %v98, %v99
    %v101 = vrot.slane %v100, 2
    %v102 = vadd.f32 %v100, %v101
    %v103 = vrot.slane %v102, 1
    %v104 = vadd.f32 %v102, %v103
    %s105 = vtos %v104
    %v106 = vld [vmem:[#allocation5] sm:$0xff]
    %v107 = vsel %vm75, %v106, -inf
    %108 = vmax.xlane.f32.xlu0 %v107
    %v109 = vpop.xlane.xlu0 %108
    %v110 = vsub.f32 %v106, %v109
    %v111 = vmul.f32 %v110, 1.442695
    %v112 = vpow.pop %v111
    %v113 = vsel %vm75, %v112, 0.0
    %114 = vadd.xlane.f32.xlu0 %v113
    %v115 = vpop.xlane.xlu0 %114
    %v116 = vlog2.pop %v115
    %v117 = vmul.f32 %v116, 0.6931472
    %v118 = vadd.f32 %v109, %v117
    %v119 = vld [vmem:[#allocation8] sm:$0xff]
    %v120 = vsel %vm70, %v119, 0.0
    %v121 = vsel %vm75, %v120, 0.0
    %122 = vadd.xlane.f32.xlu0 %v121
    %v123 = vpop.xlane.xlu0 %122
    %v124 = vsub.f32 %v118, %v123
    %v125 = vsel %vm73, %v124, 0.0
    %v126 = vsel %vm95, %v125, 0.0
    %127 = vadd.xlane.f32.xlu0 %v126
    %v128 = vpop.xlane.xlu0 %127
    %v129 = vrot.slane %v128, 4
    %v130 = vadd.f32 %v128, %v129
    %v131 = vrot.slane %v130, 2
    %v132 = vadd.f32 %v130, %v131
    %v133 = vrot.slane %v132, 1
    %v134 = vadd.f32 %v132, %v133
    %s135 = vtos %v134
    %s136 = sadd.f32 %s105, %s135
    %vm137 = vcmp.eq.s32.totalorder %v67, 0
    %vm138 = vcmp.eq.s32.totalorder %v69, 0
    %vm139 = vmand %vm137, %vm138
    %v140 = vstv %s136
    %v141 = vsel %vm139, %v140, 0.0
    %142 = vst [vmem:[#allocation10] sm:$0xff] %v141
    // Predicated region
    $region34: #{tpu_custom_call.1} parent=1 // pred_check
      _
    $region35: #{tpu_custom_call.1} parent=1 // pred_check_branch
      %144 = sbr.rel (0) target = $region37
    $region36: #{tpu_custom_call.1} parent=1 // pred_region
      %s146 = ssub.s32 128, 128
      %147 = vsyncadd [#allocation4], %s146
      %s149 = sshll.u32 [#allocation10], 4
      %s150 = int_to_ptr.vmem [resolvable:$true] %s149
      %152 = dma.vmem_to_hbm [thread:$0]  %s150, 128, %s4, [#allocation4]
    $region37: #{tpu_custom_call.1} parent=1 // pred_fallthru
      _
    // Predicated region
    $region38: #{tpu_custom_call.1} parent=1 // pred_check
      _
    $region39: #{tpu_custom_call.1} parent=1 // pred_check_branch
      %154 = sbr.rel (0) target = $region41
    $region40: #{tpu_custom_call.1} parent=1 // pred_region
      %155 = dma.done [#allocation4], 128
    $region41: #{tpu_custom_call.1} parent=1 // pred_fallthru
      _
    %156 = vsyncpa [#allocation3], 1
    %157 = vsyncpa [#allocation6], 1
    %158 = vsyncpa [#allocation9], 1
    %159 = vsyncpa [#allocation4], 1

</llo_original>
